<compile_context>
chip_gen: v5e
topology: v5e:2x2
jax: 0.10.0
libtpu: 0.0.40
codegen_flags: <defaults>
</compile_context>

<pallas_src>
import jax
import jax.numpy as jnp
from jax.experimental import pallas as pl
from jax.experimental.pallas import tpu as pltpu


def _pixel_unshuffle_kernel(x_ref, pr_ref, pc_ref, o_ref):
    # x_ref : (TP, r*H, r*W)   tile of input planes
    # pr_ref: (r*H, r*H)       row permutation matrix (dy de-interleave), f32 0/1
    # pc_ref: (r*W, r*W)       col permutation matrix (dx de-interleave), f32 0/1
    # o_ref : (TP, r*r, H, W)  tile of output planes
    TP, Hin, Win = x_ref.shape
    _, _, H, W = o_ref.shape
    r = Hin // H

    pr = pr_ref[...]
    pc = pc_ref[...]

    for t in range(TP):  # small static unroll (TP <= 8)
        xf = x_ref[t].astype(jnp.float32)                     # (r*H, r*W)
        # T[dy*H + h, dx*W + w] == x[t, h*r + dy, w*r + dx]; each output element
        # is selected by exactly one 1.0 coefficient -> bit-exact for floats.
        tmat = jnp.dot(
            jnp.dot(pr, xf, preferred_element_type=jnp.float32),
            pc,
            preferred_element_type=jnp.float32,
        )
        for dy in range(r):
            for dx in range(r):
                o_ref[t, dy * r + dx, :, :] = tmat[
                    dy * H:(dy + 1) * H, dx * W:(dx + 1) * W
                ].astype(o_ref.dtype)


def _choose_plane_tile(num_planes, plane_bytes, max_tile=8, budget_bytes=2 << 20):
    """Largest tile (<= max_tile, dividing num_planes) within a per-buffer budget."""
    tile = max(1, min(max_tile, num_planes, budget_bytes // max(plane_bytes, 1)))
    while num_planes % tile:
        tile -= 1
    return tile


def pixel_unshuffle_pallas(x, upscale_factor):
    r = int(upscale_factor)
    B, C, Hin, Win = x.shape
    assert Hin % r == 0 and Win % r == 0, "spatial dims must be divisible by r"
    H, W = Hin // r, Win // r
    P = B * C

    # Contiguous (free) view: one "plane" per (batch, channel).
    x3 = x.reshape(P, Hin, Win)

    # Permutation matrices (built once in the wrapper, tiny, constant per step
    # -> Pallas keeps them resident; no re-DMA across grid steps).
    a = jnp.arange(Hin)
    p_row = (jnp.arange(Hin)[None, :] == ((a % H) * r + a // H)[:, None]
             ).astype(jnp.float32)                             # (r*H, r*H)
    b = jnp.arange(Win)
    p_col = (jnp.arange(Win)[:, None] == ((b % W) * r + b // W)[None, :]
             ).astype(jnp.float32)                             # (r*W, r*W)

    itemsize = jnp.dtype(x.dtype).itemsize
    plane_bytes = Hin * Win * itemsize
    tp = _choose_plane_tile(P, plane_bytes)
    grid = (P // tp,)
    # TODO(synk): add spatial (H-row) tiling for single planes that exceed the
    # per-buffer VMEM budget (very large images); plane-level tiling suffices
    # for typical shapes.

    out3 = pl.pallas_call(
        _pixel_unshuffle_kernel,
        out_shape=jax.ShapeDtypeStruct((P, r * r, H, W), x.dtype),
        grid_spec=pltpu.PrefetchScalarGridSpec(
            num_scalar_prefetch=0,
            grid=grid,
            in_specs=[
                pl.BlockSpec((tp, Hin, Win), lambda i: (i, 0, 0)),
                pl.BlockSpec((Hin, Hin), lambda i: (0, 0)),
                pl.BlockSpec((Win, Win), lambda i: (0, 0)),
            ],
            out_specs=pl.BlockSpec((tp, r * r, H, W), lambda i: (i, 0, 0, 0)),
        ),
        compiler_params=pltpu.CompilerParams(
            dimension_semantics=("parallel",),   # lets v7x's 2 TCs split planes
            vmem_limit_bytes=32 * 1024 * 1024,   # >> actual tile residency (~8 MiB)
        ),
    )(x3, p_row, p_col)

    # Contiguous (free) view back to NCHW output layout.
    return out3.reshape(B, C * r * r, H, W)


def pixel_unshuffle_ref(x, upscale_factor):
    """Pure-JAX reference matching the PyTorch implementation."""
    r = int(upscale_factor)
    B, C, Hin, Win = x.shape
    H, W = Hin // r, Win // r
    v = x.reshape(B, C, H, r, W, r)
    v = jnp.transpose(v, (0, 1, 3, 5, 2, 4))
    return v.reshape(B, C * r * r, H, W)


if __name__ == "__main__":
    B, C, Hin, Win, r = 2, 4, 16, 16, 2
    key = jax.random.PRNGKey(0)
    x = jax.random.normal(key, (B, C, Hin, Win), dtype=jnp.float32)

    y = jax.block_until_ready(pixel_unshuffle_pallas(x, r))
    y_ref = jax.block_until_ready(pixel_unshuffle_ref(x, r))

    assert y.shape == (B, C * r * r, Hin // r, Win // r)
    assert jnp.allclose(y, y_ref, atol=1e-6, rtol=0.0), "mismatch vs reference"
    print("KERNEL_OK")
</pallas_src>

<mosaic_0001>
module attributes {stable_mosaic.version = 11 : i64} {
  func.func @_pixel_unshuffle_kernel(%arg0: i32, %arg1: memref<8x16x16xf32, #tpu.memory_space<vmem>>, %arg2: memref<16x16xf32, #tpu.memory_space<vmem>>, %arg3: memref<16x16xf32, #tpu.memory_space<vmem>>, %arg4: memref<8x4x8x8xf32, #tpu.memory_space<vmem>>) attributes {dimension_semantics = [#tpu.dimension_semantics<parallel>], iteration_bounds = array<i64: 1>, scalar_prefetch = 0 : i64, scratch_operands = 0 : i64, tpu.core_type = #tpu.core_type<tc>, window_params = [{transform_indices = @transform_0, window_bounds = array<i64: 8, 16, 16>}, {pipeline_mode = #tpu.pipeline_mode<synchronous>, transform_indices = @transform_1, window_bounds = array<i64: 16, 16>}, {pipeline_mode = #tpu.pipeline_mode<synchronous>, transform_indices = @transform_2, window_bounds = array<i64: 16, 16>}, {transform_indices = @transform_3, window_bounds = array<i64: 8, 4, 8, 8>}]} {
    %c0 = arith.constant 0 : index
    %c0_0 = arith.constant 0 : index
    %0 = vector.load %arg2[%c0, %c0_0] : memref<16x16xf32, #tpu.memory_space<vmem>>, vector<16x16xf32>
    %c0_1 = arith.constant 0 : index
    %c0_2 = arith.constant 0 : index
    %1 = vector.load %arg3[%c0_1, %c0_2] : memref<16x16xf32, #tpu.memory_space<vmem>>, vector<16x16xf32>
    %c0_3 = arith.constant 0 : index
    %c0_4 = arith.constant 0 : index
    %c0_5 = arith.constant 0 : index
    %2 = vector.load %arg1[%c0_3, %c0_4, %c0_5] : memref<8x16x16xf32, #tpu.memory_space<vmem>>, vector<1x16x16xf32>
    %3 = vector.shape_cast %2 : vector<1x16x16xf32> to vector<16x16xf32>
    %cst = arith.constant dense<0.000000e+00> : vector<16x16xf32>
    %4 = tpu.matmul %0, %3, %cst {dimension_numbers = #tpu.dot_dimension_numbers<[1], [0], [0], [1], [0, 0, 1, 1], [], []>} : vector<16x16xf32>, vector<16x16xf32>, vector<16x16xf32> -> vector<16x16xf32>
    %cst_6 = arith.constant dense<0.000000e+00> : vector<16x16xf32>
    %5 = tpu.matmul %4, %1, %cst_6 {dimension_numbers = #tpu.dot_dimension_numbers<[1], [0], [0], [1], [0, 0, 1, 1], [], []>} : vector<16x16xf32>, vector<16x16xf32>, vector<16x16xf32> -> vector<16x16xf32>
    %6 = vector.extract_strided_slice %5 {offsets = [0, 0], sizes = [8, 8], strides = [1, 1]} : vector<16x16xf32> to vector<8x8xf32>
    %c0_7 = arith.constant 0 : index
    %c0_8 = arith.constant 0 : index
    %c0_9 = arith.constant 0 : index
    %c0_10 = arith.constant 0 : index
    %7 = vector.load %arg4[%c0_7, %c0_8, %c0_9, %c0_10] : memref<8x4x8x8xf32, #tpu.memory_space<vmem>>, vector<1x1x8x8xf32>
    %8 = vector.shape_cast %7 : vector<1x1x8x8xf32> to vector<8x8xf32>
    %9 = vector.shape_cast %6 : vector<8x8xf32> to vector<1x1x8x8xf32>
    tpu.vector_store %arg4[%c0_7, %c0_8, %c0_9, %c0_10], %9 {strides = array<i32>} : memref<8x4x8x8xf32, #tpu.memory_space<vmem>>, vector<1x1x8x8xf32>,
    %10 = vector.extract_strided_slice %5 {offsets = [0, 8], sizes = [8, 8], strides = [1, 1]} : vector<16x16xf32> to vector<8x8xf32>
    %c0_11 = arith.constant 0 : index
    %c1 = arith.constant 1 : index
    %c0_12 = arith.constant 0 : index
    %c0_13 = arith.constant 0 : index
    %11 = vector.load %arg4[%c0_11, %c1, %c0_12, %c0_13] : memref<8x4x8x8xf32, #tpu.memory_space<vmem>>, vector<1x1x8x8xf32>
    %12 = vector.shape_cast %11 : vector<1x1x8x8xf32> to vector<8x8xf32>
    %13 = vector.shape_cast %10 : vector<8x8xf32> to vector<1x1x8x8xf32>
    tpu.vector_store %arg4[%c0_11, %c1, %c0_12, %c0_13], %13 {strides = array<i32>} : memref<8x4x8x8xf32, #tpu.memory_space<vmem>>, vector<1x1x8x8xf32>,
    %14 = vector.extract_strided_slice %5 {offsets = [8, 0], sizes = [8, 8], strides = [1, 1]} : vector<16x16xf32> to vector<8x8xf32>
    %c0_14 = arith.constant 0 : index
    %c2 = arith.constant 2 : index
    %c0_15 = arith.constant 0 : index
    %c0_16 = arith.constant 0 : index
    %15 = vector.load %arg4[%c0_14, %c2, %c0_15, %c0_16] : memref<8x4x8x8xf32, #tpu.memory_space<vmem>>, vector<1x1x8x8xf32>
    %16 = vector.shape_cast %15 : vector<1x1x8x8xf32> to vector<8x8xf32>
    %17 = vector.shape_cast %14 : vector<8x8xf32> to vector<1x1x8x8xf32>
    tpu.vector_store %arg4[%c0_14, %c2, %c0_15, %c0_16], %17 {strides = array<i32>} : memref<8x4x8x8xf32, #tpu.memory_space<vmem>>, vector<1x1x8x8xf32>,
    %18 = vector.extract_strided_slice %5 {offsets = [8, 8], sizes = [8, 8], strides = [1, 1]} : vector<16x16xf32> to vector<8x8xf32>
    %c0_17 = arith.constant 0 : index
    %c3 = arith.constant 3 : index
    %c0_18 = arith.constant 0 : index
    %c0_19 = arith.constant 0 : index
    %19 = vector.load %arg4[%c0_17, %c3, %c0_18, %c0_19] : memref<8x4x8x8xf32, #tpu.memory_space<vmem>>, vector<1x1x8x8xf32>
    %20 = vector.shape_cast %19 : vector<1x1x8x8xf32> to vector<8x8xf32>
    %21 = vector.shape_cast %18 : vector<8x8xf32> to vector<1x1x8x8xf32>
    tpu.vector_store %arg4[%c0_17, %c3, %c0_18, %c0_19], %21 {strides = array<i32>} : memref<8x4x8x8xf32, #tpu.memory_space<vmem>>, vector<1x1x8x8xf32>,
    %c1_20 = arith.constant 1 : index
    %c0_21 = arith.constant 0 : index
    %c0_22 = arith.constant 0 : index
    %22 = vector.load %arg1[%c1_20, %c0_21, %c0_22] : memref<8x16x16xf32, #tpu.memory_space<vmem>>, vector<1x16x16xf32>
    %23 = vector.shape_cast %22 : vector<1x16x16xf32> to vector<16x16xf32>
    %cst_23 = arith.constant dense<0.000000e+00> : vector<16x16xf32>
    %24 = tpu.matmul %0, %23, %cst_23 {dimension_numbers = #tpu.dot_dimension_numbers<[1], [0], [0], [1], [0, 0, 1, 1], [], []>} : vector<16x16xf32>, vector<16x16xf32>, vector<16x16xf32> -> vector<16x16xf32>
    %cst_24 = arith.constant dense<0.000000e+00> : vector<16x16xf32>
    %25 = tpu.matmul %24, %1, %cst_24 {dimension_numbers = #tpu.dot_dimension_numbers<[1], [0], [0], [1], [0, 0, 1, 1], [], []>} : vector<16x16xf32>, vector<16x16xf32>, vector<16x16xf32> -> vector<16x16xf32>
    %26 = vector.extract_strided_slice %25 {offsets = [0, 0], sizes = [8, 8], strides = [1, 1]} : vector<16x16xf32> to vector<8x8xf32>
    %c1_25 = arith.constant 1 : index
    %c0_26 = arith.constant 0 : index
    %c0_27 = arith.constant 0 : index
    %c0_28 = arith.constant 0 : index
    %27 = vector.load %arg4[%c1_25, %c0_26, %c0_27, %c0_28] : memref<8x4x8x8xf32, #tpu.memory_space<vmem>>, vector<1x1x8x8xf32>
    %28 = vector.shape_cast %27 : vector<1x1x8x8xf32> to vector<8x8xf32>
    %29 = vector.shape_cast %26 : vector<8x8xf32> to vector<1x1x8x8xf32>
    tpu.vector_store %arg4[%c1_25, %c0_26, %c0_27, %c0_28], %29 {strides = array<i32>} : memref<8x4x8x8xf32, #tpu.memory_space<vmem>>, vector<1x1x8x8xf32>,
    %30 = vector.extract_strided_slice %25 {offsets = [0, 8], sizes = [8, 8], strides = [1, 1]} : vector<16x16xf32> to vector<8x8xf32>
    %c1_29 = arith.constant 1 : index
    %c1_30 = arith.constant 1 : index
    %c0_31 = arith.constant 0 : index
    %c0_32 = arith.constant 0 : index
    %31 = vector.load %arg4[%c1_29, %c1_30, %c0_31, %c0_32] : memref<8x4x8x8xf32, #tpu.memory_space<vmem>>, vector<1x1x8x8xf32>
    %32 = vector.shape_cast %31 : vector<1x1x8x8xf32> to vector<8x8xf32>
    %33 = vector.shape_cast %30 : vector<8x8xf32> to vector<1x1x8x8xf32>
    tpu.vector_store %arg4[%c1_29, %c1_30, %c0_31, %c0_32], %33 {strides = array<i32>} : memref<8x4x8x8xf32, #tpu.memory_space<vmem>>, vector<1x1x8x8xf32>,
    %34 = vector.extract_strided_slice %25 {offsets = [8, 0], sizes = [8, 8], strides = [1, 1]} : vector<16x16xf32> to vector<8x8xf32>
    %c1_33 = arith.constant 1 : index
    %c2_34 = arith.constant 2 : index
    %c0_35 = arith.constant 0 : index
    %c0_36 = arith.constant 0 : index
    %35 = vector.load %arg4[%c1_33, %c2_34, %c0_35, %c0_36] : memref<8x4x8x8xf32, #tpu.memory_space<vmem>>, vector<1x1x8x8xf32>
    %36 = vector.shape_cast %35 : vector<1x1x8x8xf32> to vector<8x8xf32>
    %37 = vector.shape_cast %34 : vector<8x8xf32> to vector<1x1x8x8xf32>
    tpu.vector_store %arg4[%c1_33, %c2_34, %c0_35, %c0_36], %37 {strides = array<i32>} : memref<8x4x8x8xf32, #tpu.memory_space<vmem>>, vector<1x1x8x8xf32>,
    %38 = vector.extract_strided_slice %25 {offsets = [8, 8], sizes = [8, 8], strides = [1, 1]} : vector<16x16xf32> to vector<8x8xf32>
    %c1_37 = arith.constant 1 : index
    %c3_38 = arith.constant 3 : index
    %c0_39 = arith.constant 0 : index
    %c0_40 = arith.constant 0 : index
    %39 = vector.load %arg4[%c1_37, %c3_38, %c0_39, %c0_40] : memref<8x4x8x8xf32, #tpu.memory_space<vmem>>, vector<1x1x8x8xf32>
    %40 = vector.shape_cast %39 : vector<1x1x8x8xf32> to vector<8x8xf32>
    %41 = vector.shape_cast %38 : vector<8x8xf32> to vector<1x1x8x8xf32>
    tpu.vector_store %arg4[%c1_37, %c3_38, %c0_39, %c0_40], %41 {strides = array<i32>} : memref<8x4x8x8xf32, #tpu.memory_space<vmem>>, vector<1x1x8x8xf32>,
    %c2_41 = arith.constant 2 : index
    %c0_42 = arith.constant 0 : index
    %c0_43 = arith.constant 0 : index
    %42 = vector.load %arg1[%c2_41, %c0_42, %c0_43] : memref<8x16x16xf32, #tpu.memory_space<vmem>>, vector<1x16x16xf32>
    %43 = vector.shape_cast %42 : vector<1x16x16xf32> to vector<16x16xf32>
    %cst_44 = arith.constant dense<0.000000e+00> : vector<16x16xf32>
    %44 = tpu.matmul %0, %43, %cst_44 {dimension_numbers = #tpu.dot_dimension_numbers<[1], [0], [0], [1], [0, 0, 1, 1], [], []>} : vector<16x16xf32>, vector<16x16xf32>, vector<16x16xf32> -> vector<16x16xf32>
    %cst_45 = arith.constant dense<0.000000e+00> : vector<16x16xf32>
    %45 = tpu.matmul %44, %1, %cst_45 {dimension_numbers = #tpu.dot_dimension_numbers<[1], [0], [0], [1], [0, 0, 1, 1], [], []>} : vector<16x16xf32>, vector<16x16xf32>, vector<16x16xf32> -> vector<16x16xf32>
    %46 = vector.extract_strided_slice %45 {offsets = [0, 0], sizes = [8, 8], strides = [1, 1]} : vector<16x16xf32> to vector<8x8xf32>
    %c2_46 = arith.constant 2 : index
    %c0_47 = arith.constant 0 : index
    %c0_48 = arith.constant 0 : index
    %c0_49 = arith.constant 0 : index
    %47 = vector.load %arg4[%c2_46, %c0_47, %c0_48, %c0_49] : memref<8x4x8x8xf32, #tpu.memory_space<vmem>>, vector<1x1x8x8xf32>
    %48 = vector.shape_cast %47 : vector<1x1x8x8xf32> to vector<8x8xf32>
    %49 = vector.shape_cast %46 : vector<8x8xf32> to vector<1x1x8x8xf32>
    tpu.vector_store %arg4[%c2_46, %c0_47, %c0_48, %c0_49], %49 {strides = array<i32>} : memref<8x4x8x8xf32, #tpu.memory_space<vmem>>, vector<1x1x8x8xf32>,
    %50 = vector.extract_strided_slice %45 {offsets = [0, 8], sizes = [8, 8], strides = [1, 1]} : vector<16x16xf32> to vector<8x8xf32>
    %c2_50 = arith.constant 2 : index
    %c1_51 = arith.constant 1 : index
    %c0_52 = arith.constant 0 : index
    %c0_53 = arith.constant 0 : index
    %51 = vector.load %arg4[%c2_50, %c1_51, %c0_52, %c0_53] : memref<8x4x8x8xf32, #tpu.memory_space<vmem>>, vector<1x1x8x8xf32>
    %52 = vector.shape_cast %51 : vector<1x1x8x8xf32> to vector<8x8xf32>
    %53 = vector.shape_cast %50 : vector<8x8xf32> to vector<1x1x8x8xf32>
    tpu.vector_store %arg4[%c2_50, %c1_51, %c0_52, %c0_53], %53 {strides = array<i32>} : memref<8x4x8x8xf32, #tpu.memory_space<vmem>>, vector<1x1x8x8xf32>,
    %54 = vector.extract_strided_slice %45 {offsets = [8, 0], sizes = [8, 8], strides = [1, 1]} : vector<16x16xf32> to vector<8x8xf32>
    %c2_54 = arith.constant 2 : index
    %c2_55 = arith.constant 2 : index
    %c0_56 = arith.constant 0 : index
    %c0_57 = arith.constant 0 : index
    %55 = vector.load %arg4[%c2_54, %c2_55, %c0_56, %c0_57] : memref<8x4x8x8xf32, #tpu.memory_space<vmem>>, vector<1x1x8x8xf32>
    %56 = vector.shape_cast %55 : vector<1x1x8x8xf32> to vector<8x8xf32>
    %57 = vector.shape_cast %54 : vector<8x8xf32> to vector<1x1x8x8xf32>
    tpu.vector_store %arg4[%c2_54, %c2_55, %c0_56, %c0_57], %57 {strides = array<i32>} : memref<8x4x8x8xf32, #tpu.memory_space<vmem>>, vector<1x1x8x8xf32>,
    %58 = vector.extract_strided_slice %45 {offsets = [8, 8], sizes = [8, 8], strides = [1, 1]} : vector<16x16xf32> to vector<8x8xf32>
    %c2_58 = arith.constant 2 : index
    %c3_59 = arith.constant 3 : index
    %c0_60 = arith.constant 0 : index
    %c0_61 = arith.constant 0 : index
    %59 = vector.load %arg4[%c2_58, %c3_59, %c0_60, %c0_61] : memref<8x4x8x8xf32, #tpu.memory_space<vmem>>, vector<1x1x8x8xf32>
    %60 = vector.shape_cast %59 : vector<1x1x8x8xf32> to vector<8x8xf32>
    %61 = vector.shape_cast %58 : vector<8x8xf32> to vector<1x1x8x8xf32>
    tpu.vector_store %arg4[%c2_58, %c3_59, %c0_60, %c0_61], %61 {strides = array<i32>} : memref<8x4x8x8xf32, #tpu.memory_space<vmem>>, vector<1x1x8x8xf32>,
    %c3_62 = arith.constant 3 : index
    %c0_63 = arith.constant 0 : index
    %c0_64 = arith.constant 0 : index
    %62 = vector.load %arg1[%c3_62, %c0_63, %c0_64] : memref<8x16x16xf32, #tpu.memory_space<vmem>>, vector<1x16x16xf32>
    %63 = vector.shape_cast %62 : vector<1x16x16xf32> to vector<16x16xf32>
    %cst_65 = arith.constant dense<0.000000e+00> : vector<16x16xf32>
    %64 = tpu.matmul %0, %63, %cst_65 {dimension_numbers = #tpu.dot_dimension_numbers<[1], [0], [0], [1], [0, 0, 1, 1], [], []>} : vector<16x16xf32>, vector<16x16xf32>, vector<16x16xf32> -> vector<16x16xf32>
    %cst_66 = arith.constant dense<0.000000e+00> : vector<16x16xf32>
    %65 = tpu.matmul %64, %1, %cst_66 {dimension_numbers = #tpu.dot_dimension_numbers<[1], [0], [0], [1], [0, 0, 1, 1], [], []>} : vector<16x16xf32>, vector<16x16xf32>, vector<16x16xf32> -> vector<16x16xf32>
    %66 = vector.extract_strided_slice %65 {offsets = [0, 0], sizes = [8, 8], strides = [1, 1]} : vector<16x16xf32> to vector<8x8xf32>
    %c3_67 = arith.constant 3 : index
    %c0_68 = arith.constant 0 : index
    %c0_69 = arith.constant 0 : index
    %c0_70 = arith.constant 0 : index
    %67 = vector.load %arg4[%c3_67, %c0_68, %c0_69, %c0_70] : memref<8x4x8x8xf32, #tpu.memory_space<vmem>>, vector<1x1x8x8xf32>
    %68 = vector.shape_cast %67 : vector<1x1x8x8xf32> to vector<8x8xf32>
    %69 = vector.shape_cast %66 : vector<8x8xf32> to vector<1x1x8x8xf32>
    tpu.vector_store %arg4[%c3_67, %c0_68, %c0_69, %c0_70], %69 {strides = array<i32>} : memref<8x4x8x8xf32, #tpu.memory_space<vmem>>, vector<1x1x8x8xf32>,
    %70 = vector.extract_strided_slice %65 {offsets = [0, 8], sizes = [8, 8], strides = [1, 1]} : vector<16x16xf32> to vector<8x8xf32>
    %c3_71 = arith.constant 3 : index
    %c1_72 = arith.constant 1 : index
    %c0_73 = arith.constant 0 : index
    %c0_74 = arith.constant 0 : index
    %71 = vector.load %arg4[%c3_71, %c1_72, %c0_73, %c0_74] : memref<8x4x8x8xf32, #tpu.memory_space<vmem>>, vector<1x1x8x8xf32>
    %72 = vector.shape_cast %71 : vector<1x1x8x8xf32> to vector<8x8xf32>
    %73 = vector.shape_cast %70 : vector<8x8xf32> to vector<1x1x8x8xf32>
    tpu.vector_store %arg4[%c3_71, %c1_72, %c0_73, %c0_74], %73 {strides = array<i32>} : memref<8x4x8x8xf32, #tpu.memory_space<vmem>>, vector<1x1x8x8xf32>,
    %74 = vector.extract_strided_slice %65 {offsets = [8, 0], sizes = [8, 8], strides = [1, 1]} : vector<16x16xf32> to vector<8x8xf32>
    %c3_75 = arith.constant 3 : index
    %c2_76 = arith.constant 2 : index
    %c0_77 = arith.constant 0 : index
    %c0_78 = arith.constant 0 : index
    %75 = vector.load %arg4[%c3_75, %c2_76, %c0_77, %c0_78] : memref<8x4x8x8xf32, #tpu.memory_space<vmem>>, vector<1x1x8x8xf32>
    %76 = vector.shape_cast %75 : vector<1x1x8x8xf32> to vector<8x8xf32>
    %77 = vector.shape_cast %74 : vector<8x8xf32> to vector<1x1x8x8xf32>
    tpu.vector_store %arg4[%c3_75, %c2_76, %c0_77, %c0_78], %77 {strides = array<i32>} : memref<8x4x8x8xf32, #tpu.memory_space<vmem>>, vector<1x1x8x8xf32>,
    %78 = vector.extract_strided_slice %65 {offsets = [8, 8], sizes = [8, 8], strides = [1, 1]} : vector<16x16xf32> to vector<8x8xf32>
    %c3_79 = arith.constant 3 : index
    %c3_80 = arith.constant 3 : index
    %c0_81 = arith.constant 0 : index
    %c0_82 = arith.constant 0 : index
    %79 = vector.load %arg4[%c3_79, %c3_80, %c0_81, %c0_82] : memref<8x4x8x8xf32, #tpu.memory_space<vmem>>, vector<1x1x8x8xf32>
    %80 = vector.shape_cast %79 : vector<1x1x8x8xf32> to vector<8x8xf32>
    %81 = vector.shape_cast %78 : vector<8x8xf32> to vector<1x1x8x8xf32>
    tpu.vector_store %arg4[%c3_79, %c3_80, %c0_81, %c0_82], %81 {strides = array<i32>} : memref<8x4x8x8xf32, #tpu.memory_space<vmem>>, vector<1x1x8x8xf32>,
    %c4 = arith.constant 4 : index
    %c0_83 = arith.constant 0 : index
    %c0_84 = arith.constant 0 : index
    %82 = vector.load %arg1[%c4, %c0_83, %c0_84] : memref<8x16x16xf32, #tpu.memory_space<vmem>>, vector<1x16x16xf32>
    %83 = vector.shape_cast %82 : vector<1x16x16xf32> to vector<16x16xf32>
    %cst_85 = arith.constant dense<0.000000e+00> : vector<16x16xf32>
    %84 = tpu.matmul %0, %83, %cst_85 {dimension_numbers = #tpu.dot_dimension_numbers<[1], [0], [0], [1], [0, 0, 1, 1], [], []>} : vector<16x16xf32>, vector<16x16xf32>, vector<16x16xf32> -> vector<16x16xf32>
    %cst_86 = arith.constant dense<0.000000e+00> : vector<16x16xf32>
    %85 = tpu.matmul %84, %1, %cst_86 {dimension_numbers = #tpu.dot_dimension_numbers<[1], [0], [0], [1], [0, 0, 1, 1], [], []>} : vector<16x16xf32>, vector<16x16xf32>, vector<16x16xf32> -> vector<16x16xf32>
    %86 = vector.extract_strided_slice %85 {offsets = [0, 0], sizes = [8, 8], strides = [1, 1]} : vector<16x16xf32> to vector<8x8xf32>
    %c4_87 = arith.constant 4 : index
    %c0_88 = arith.constant 0 : index
    %c0_89 = arith.constant 0 : index
    %c0_90 = arith.constant 0 : index
    %87 = vector.load %arg4[%c4_87, %c0_88, %c0_89, %c0_90] : memref<8x4x8x8xf32, #tpu.memory_space<vmem>>, vector<1x1x8x8xf32>
    %88 = vector.shape_cast %87 : vector<1x1x8x8xf32> to vector<8x8xf32>
    %89 = vector.shape_cast %86 : vector<8x8xf32> to vector<1x1x8x8xf32>
    tpu.vector_store %arg4[%c4_87, %c0_88, %c0_89, %c0_90], %89 {strides = array<i32>} : memref<8x4x8x8xf32, #tpu.memory_space<vmem>>, vector<1x1x8x8xf32>,
    %90 = vector.extract_strided_slice %85 {offsets = [0, 8], sizes = [8, 8], strides = [1, 1]} : vector<16x16xf32> to vector<8x8xf32>
    %c4_91 = arith.constant 4 : index
    %c1_92 = arith.constant 1 : index
    %c0_93 = arith.constant 0 : index
    %c0_94 = arith.constant 0 : index
    %91 = vector.load %arg4[%c4_91, %c1_92, %c0_93, %c0_94] : memref<8x4x8x8xf32, #tpu.memory_space<vmem>>, vector<1x1x8x8xf32>
    %92 = vector.shape_cast %91 : vector<1x1x8x8xf32> to vector<8x8xf32>
    %93 = vector.shape_cast %90 : vector<8x8xf32> to vector<1x1x8x8xf32>
    tpu.vector_store %arg4[%c4_91, %c1_92, %c0_93, %c0_94], %93 {strides = array<i32>} : memref<8x4x8x8xf32, #tpu.memory_space<vmem>>, vector<1x1x8x8xf32>,
    %94 = vector.extract_strided_slice %85 {offsets = [8, 0], sizes = [8, 8], strides = [1, 1]} : vector<16x16xf32> to vector<8x8xf32>
    %c4_95 = arith.constant 4 : index
    %c2_96 = arith.constant 2 : index
    %c0_97 = arith.constant 0 : index
    %c0_98 = arith.constant 0 : index
    %95 = vector.load %arg4[%c4_95, %c2_96, %c0_97, %c0_98] : memref<8x4x8x8xf32, #tpu.memory_space<vmem>>, vector<1x1x8x8xf32>
    %96 = vector.shape_cast %95 : vector<1x1x8x8xf32> to vector<8x8xf32>
    %97 = vector.shape_cast %94 : vector<8x8xf32> to vector<1x1x8x8xf32>
    tpu.vector_store %arg4[%c4_95, %c2_96, %c0_97, %c0_98], %97 {strides = array<i32>} : memref<8x4x8x8xf32, #tpu.memory_space<vmem>>, vector<1x1x8x8xf32>,
    %98 = vector.extract_strided_slice %85 {offsets = [8, 8], sizes = [8, 8], strides = [1, 1]} : vector<16x16xf32> to vector<8x8xf32>
    %c4_99 = arith.constant 4 : index
    %c3_100 = arith.constant 3 : index
    %c0_101 = arith.constant 0 : index
    %c0_102 = arith.constant 0 : index
    %99 = vector.load %arg4[%c4_99, %c3_100, %c0_101, %c0_102] : memref<8x4x8x8xf32, #tpu.memory_space<vmem>>, vector<1x1x8x8xf32>
    %100 = vector.shape_cast %99 : vector<1x1x8x8xf32> to vector<8x8xf32>
    %101 = vector.shape_cast %98 : vector<8x8xf32> to vector<1x1x8x8xf32>
    tpu.vector_store %arg4[%c4_99, %c3_100, %c0_101, %c0_102], %101 {strides = array<i32>} : memref<8x4x8x8xf32, #tpu.memory_space<vmem>>, vector<1x1x8x8xf32>,
    %c5 = arith.constant 5 : index
    %c0_103 = arith.constant 0 : index
    %c0_104 = arith.constant 0 : index
    %102 = vector.load %arg1[%c5, %c0_103, %c0_104] : memref<8x16x16xf32, #tpu.memory_space<vmem>>, vector<1x16x16xf32>
    %103 = vector.shape_cast %102 : vector<1x16x16xf32> to vector<16x16xf32>
    %cst_105 = arith.constant dense<0.000000e+00> : vector<16x16xf32>
    %104 = tpu.matmul %0, %103, %cst_105 {dimension_numbers = #tpu.dot_dimension_numbers<[1], [0], [0], [1], [0, 0, 1, 1], [], []>} : vector<16x16xf32>, vector<16x16xf32>, vector<16x16xf32> -> vector<16x16xf32>
    %cst_106 = arith.constant dense<0.000000e+00> : vector<16x16xf32>
    %105 = tpu.matmul %104, %1, %cst_106 {dimension_numbers = #tpu.dot_dimension_numbers<[1], [0], [0], [1], [0, 0, 1, 1], [], []>} : vector<16x16xf32>, vector<16x16xf32>, vector<16x16xf32> -> vector<16x16xf32>
    %106 = vector.extract_strided_slice %105 {offsets = [0, 0], sizes = [8, 8], strides = [1, 1]} : vector<16x16xf32> to vector<8x8xf32>
    %c5_107 = arith.constant 5 : index
    %c0_108 = arith.constant 0 : index
    %c0_109 = arith.constant 0 : index
    %c0_110 = arith.constant 0 : index
    %107 = vector.load %arg4[%c5_107, %c0_108, %c0_109, %c0_110] : memref<8x4x8x8xf32, #tpu.memory_space<vmem>>, vector<1x1x8x8xf32>
    %108 = vector.shape_cast %107 : vector<1x1x8x8xf32> to vector<8x8xf32>
    %109 = vector.shape_cast %106 : vector<8x8xf32> to vector<1x1x8x8xf32>
    tpu.vector_store %arg4[%c5_107, %c0_108, %c0_109, %c0_110], %109 {strides = array<i32>} : memref<8x4x8x8xf32, #tpu.memory_space<vmem>>, vector<1x1x8x8xf32>,
    %110 = vector.extract_strided_slice %105 {offsets = [0, 8], sizes = [8, 8], strides = [1, 1]} : vector<16x16xf32> to vector<8x8xf32>
    %c5_111 = arith.constant 5 : index
    %c1_112 = arith.constant 1 : index
    %c0_113 = arith.constant 0 : index
    %c0_114 = arith.constant 0 : index
    %111 = vector.load %arg4[%c5_111, %c1_112, %c0_113, %c0_114] : memref<8x4x8x8xf32, #tpu.memory_space<vmem>>, vector<1x1x8x8xf32>
    %112 = vector.shape_cast %111 : vector<1x1x8x8xf32> to vector<8x8xf32>
    %113 = vector.shape_cast %110 : vector<8x8xf32> to vector<1x1x8x8xf32>
    tpu.vector_store %arg4[%c5_111, %c1_112, %c0_113, %c0_114], %113 {strides = array<i32>} : memref<8x4x8x8xf32, #tpu.memory_space<vmem>>, vector<1x1x8x8xf32>,
    %114 = vector.extract_strided_slice %105 {offsets = [8, 0], sizes = [8, 8], strides = [1, 1]} : vector<16x16xf32> to vector<8x8xf32>
    %c5_115 = arith.constant 5 : index
    %c2_116 = arith.constant 2 : index
    %c0_117 = arith.constant 0 : index
    %c0_118 = arith.constant 0 : index
    %115 = vector.load %arg4[%c5_115, %c2_116, %c0_117, %c0_118] : memref<8x4x8x8xf32, #tpu.memory_space<vmem>>, vector<1x1x8x8xf32>
    %116 = vector.shape_cast %115 : vector<1x1x8x8xf32> to vector<8x8xf32>
    %117 = vector.shape_cast %114 : vector<8x8xf32> to vector<1x1x8x8xf32>
    tpu.vector_store %arg4[%c5_115, %c2_116, %c0_117, %c0_118], %117 {strides = array<i32>} : memref<8x4x8x8xf32, #tpu.memory_space<vmem>>, vector<1x1x8x8xf32>,
    %118 = vector.extract_strided_slice %105 {offsets = [8, 8], sizes = [8, 8], strides = [1, 1]} : vector<16x16xf32> to vector<8x8xf32>
    %c5_119 = arith.constant 5 : index
    %c3_120 = arith.constant 3 : index
    %c0_121 = arith.constant 0 : index
    %c0_122 = arith.constant 0 : index
    %119 = vector.load %arg4[%c5_119, %c3_120, %c0_121, %c0_122] : memref<8x4x8x8xf32, #tpu.memory_space<vmem>>, vector<1x1x8x8xf32>
    %120 = vector.shape_cast %119 : vector<1x1x8x8xf32> to vector<8x8xf32>
    %121 = vector.shape_cast %118 : vector<8x8xf32> to vector<1x1x8x8xf32>
    tpu.vector_store %arg4[%c5_119, %c3_120, %c0_121, %c0_122], %121 {strides = array<i32>} : memref<8x4x8x8xf32, #tpu.memory_space<vmem>>, vector<1x1x8x8xf32>,
    %c6 = arith.constant 6 : index
    %c0_123 = arith.constant 0 : index
    %c0_124 = arith.constant 0 : index
    %122 = vector.load %arg1[%c6, %c0_123, %c0_124] : memref<8x16x16xf32, #tpu.memory_space<vmem>>, vector<1x16x16xf32>
    %123 = vector.shape_cast %122 : vector<1x16x16xf32> to vector<16x16xf32>
    %cst_125 = arith.constant dense<0.000000e+00> : vector<16x16xf32>
    %124 = tpu.matmul %0, %123, %cst_125 {dimension_numbers = #tpu.dot_dimension_numbers<[1], [0], [0], [1], [0, 0, 1, 1], [], []>} : vector<16x16xf32>, vector<16x16xf32>, vector<16x16xf32> -> vector<16x16xf32>
    %cst_126 = arith.constant dense<0.000000e+00> : vector<16x16xf32>
    %125 = tpu.matmul %124, %1, %cst_126 {dimension_numbers = #tpu.dot_dimension_numbers<[1], [0], [0], [1], [0, 0, 1, 1], [], []>} : vector<16x16xf32>, vector<16x16xf32>, vector<16x16xf32> -> vector<16x16xf32>
    %126 = vector.extract_strided_slice %125 {offsets = [0, 0], sizes = [8, 8], strides = [1, 1]} : vector<16x16xf32> to vector<8x8xf32>
    %c6_127 = arith.constant 6 : index
    %c0_128 = arith.constant 0 : index
    %c0_129 = arith.constant 0 : index
    %c0_130 = arith.constant 0 : index
    %127 = vector.load %arg4[%c6_127, %c0_128, %c0_129, %c0_130] : memref<8x4x8x8xf32, #tpu.memory_space<vmem>>, vector<1x1x8x8xf32>
    %128 = vector.shape_cast %127 : vector<1x1x8x8xf32> to vector<8x8xf32>
    %129 = vector.shape_cast %126 : vector<8x8xf32> to vector<1x1x8x8xf32>
    tpu.vector_store %arg4[%c6_127, %c0_128, %c0_129, %c0_130], %129 {strides = array<i32>} : memref<8x4x8x8xf32, #tpu.memory_space<vmem>>, vector<1x1x8x8xf32>,
    %130 = vector.extract_strided_slice %125 {offsets = [0, 8], sizes = [8, 8], strides = [1, 1]} : vector<16x16xf32> to vector<8x8xf32>
    %c6_131 = arith.constant 6 : index
    %c1_132 = arith.constant 1 : index
    %c0_133 = arith.constant 0 : index
    %c0_134 = arith.constant 0 : index
    %131 = vector.load %arg4[%c6_131, %c1_132, %c0_133, %c0_134] : memref<8x4x8x8xf32, #tpu.memory_space<vmem>>, vector<1x1x8x8xf32>
    %132 = vector.shape_cast %131 : vector<1x1x8x8xf32> to vector<8x8xf32>
    %133 = vector.shape_cast %130 : vector<8x8xf32> to vector<1x1x8x8xf32>
    tpu.vector_store %arg4[%c6_131, %c1_132, %c0_133, %c0_134], %133 {strides = array<i32>} : memref<8x4x8x8xf32, #tpu.memory_space<vmem>>, vector<1x1x8x8xf32>,
    %134 = vector.extract_strided_slice %125 {offsets = [8, 0], sizes = [8, 8], strides = [1, 1]} : vector<16x16xf32> to vector<8x8xf32>
    %c6_135 = arith.constant 6 : index
    %c2_136 = arith.constant 2 : index
    %c0_137 = arith.constant 0 : index
    %c0_138 = arith.constant 0 : index
    %135 = vector.load %arg4[%c6_135, %c2_136, %c0_137, %c0_138] : memref<8x4x8x8xf32, #tpu.memory_space<vmem>>, vector<1x1x8x8xf32>
    %136 = vector.shape_cast %135 : vector<1x1x8x8xf32> to vector<8x8xf32>
    %137 = vector.shape_cast %134 : vector<8x8xf32> to vector<1x1x8x8xf32>
    tpu.vector_store %arg4[%c6_135, %c2_136, %c0_137, %c0_138], %137 {strides = array<i32>} : memref<8x4x8x8xf32, #tpu.memory_space<vmem>>, vector<1x1x8x8xf32>,
    %138 = vector.extract_strided_slice %125 {offsets = [8, 8], sizes = [8, 8], strides = [1, 1]} : vector<16x16xf32> to vector<8x8xf32>
    %c6_139 = arith.constant 6 : index
    %c3_140 = arith.constant 3 : index
    %c0_141 = arith.constant 0 : index
    %c0_142 = arith.constant 0 : index
    %139 = vector.load %arg4[%c6_139, %c3_140, %c0_141, %c0_142] : memref<8x4x8x8xf32, #tpu.memory_space<vmem>>, vector<1x1x8x8xf32>
    %140 = vector.shape_cast %139 : vector<1x1x8x8xf32> to vector<8x8xf32>
    %141 = vector.shape_cast %138 : vector<8x8xf32> to vector<1x1x8x8xf32>
    tpu.vector_store %arg4[%c6_139, %c3_140, %c0_141, %c0_142], %141 {strides = array<i32>} : memref<8x4x8x8xf32, #tpu.memory_space<vmem>>, vector<1x1x8x8xf32>,
    %c7 = arith.constant 7 : index
    %c0_143 = arith.constant 0 : index
    %c0_144 = arith.constant 0 : index
    %142 = vector.load %arg1[%c7, %c0_143, %c0_144] : memref<8x16x16xf32, #tpu.memory_space<vmem>>, vector<1x16x16xf32>
    %143 = vector.shape_cast %142 : vector<1x16x16xf32> to vector<16x16xf32>
    %cst_145 = arith.constant dense<0.000000e+00> : vector<16x16xf32>
    %144 = tpu.matmul %0, %143, %cst_145 {dimension_numbers = #tpu.dot_dimension_numbers<[1], [0], [0], [1], [0, 0, 1, 1], [], []>} : vector<16x16xf32>, vector<16x16xf32>, vector<16x16xf32> -> vector<16x16xf32>
    %cst_146 = arith.constant dense<0.000000e+00> : vector<16x16xf32>
    %145 = tpu.matmul %144, %1, %cst_146 {dimension_numbers = #tpu.dot_dimension_numbers<[1], [0], [0], [1], [0, 0, 1, 1], [], []>} : vector<16x16xf32>, vector<16x16xf32>, vector<16x16xf32> -> vector<16x16xf32>
    %146 = vector.extract_strided_slice %145 {offsets = [0, 0], sizes = [8, 8], strides = [1, 1]} : vector<16x16xf32> to vector<8x8xf32>
    %c7_147 = arith.constant 7 : index
    %c0_148 = arith.constant 0 : index
    %c0_149 = arith.constant 0 : index
    %c0_150 = arith.constant 0 : index
    %147 = vector.load %arg4[%c7_147, %c0_148, %c0_149, %c0_150] : memref<8x4x8x8xf32, #tpu.memory_space<vmem>>, vector<1x1x8x8xf32>
    %148 = vector.shape_cast %147 : vector<1x1x8x8xf32> to vector<8x8xf32>
    %149 = vector.shape_cast %146 : vector<8x8xf32> to vector<1x1x8x8xf32>
    tpu.vector_store %arg4[%c7_147, %c0_148, %c0_149, %c0_150], %149 {strides = array<i32>} : memref<8x4x8x8xf32, #tpu.memory_space<vmem>>, vector<1x1x8x8xf32>,
    %150 = vector.extract_strided_slice %145 {offsets = [0, 8], sizes = [8, 8], strides = [1, 1]} : vector<16x16xf32> to vector<8x8xf32>
    %c7_151 = arith.constant 7 : index
    %c1_152 = arith.constant 1 : index
    %c0_153 = arith.constant 0 : index
    %c0_154 = arith.constant 0 : index
    %151 = vector.load %arg4[%c7_151, %c1_152, %c0_153, %c0_154] : memref<8x4x8x8xf32, #tpu.memory_space<vmem>>, vector<1x1x8x8xf32>
    %152 = vector.shape_cast %151 : vector<1x1x8x8xf32> to vector<8x8xf32>
    %153 = vector.shape_cast %150 : vector<8x8xf32> to vector<1x1x8x8xf32>
    tpu.vector_store %arg4[%c7_151, %c1_152, %c0_153, %c0_154], %153 {strides = array<i32>} : memref<8x4x8x8xf32, #tpu.memory_space<vmem>>, vector<1x1x8x8xf32>,
    %154 = vector.extract_strided_slice %145 {offsets = [8, 0], sizes = [8, 8], strides = [1, 1]} : vector<16x16xf32> to vector<8x8xf32>
    %c7_155 = arith.constant 7 : index
    %c2_156 = arith.constant 2 : index
    %c0_157 = arith.constant 0 : index
    %c0_158 = arith.constant 0 : index
    %155 = vector.load %arg4[%c7_155, %c2_156, %c0_157, %c0_158] : memref<8x4x8x8xf32, #tpu.memory_space<vmem>>, vector<1x1x8x8xf32>
    %156 = vector.shape_cast %155 : vector<1x1x8x8xf32> to vector<8x8xf32>
    %157 = vector.shape_cast %154 : vector<8x8xf32> to vector<1x1x8x8xf32>
    tpu.vector_store %arg4[%c7_155, %c2_156, %c0_157, %c0_158], %157 {strides = array<i32>} : memref<8x4x8x8xf32, #tpu.memory_space<vmem>>, vector<1x1x8x8xf32>,
    %158 = vector.extract_strided_slice %145 {offsets = [8, 8], sizes = [8, 8], strides = [1, 1]} : vector<16x16xf32> to vector<8x8xf32>
    %c7_159 = arith.constant 7 : index
    %c3_160 = arith.constant 3 : index
    %c0_161 = arith.constant 0 : index
    %c0_162 = arith.constant 0 : index
    %159 = vector.load %arg4[%c7_159, %c3_160, %c0_161, %c0_162] : memref<8x4x8x8xf32, #tpu.memory_space<vmem>>, vector<1x1x8x8xf32>
    %160 = vector.shape_cast %159 : vector<1x1x8x8xf32> to vector<8x8xf32>
    %161 = vector.shape_cast %158 : vector<8x8xf32> to vector<1x1x8x8xf32>
    tpu.vector_store %arg4[%c7_159, %c3_160, %c0_161, %c0_162], %161 {strides = array<i32>} : memref<8x4x8x8xf32, #tpu.memory_space<vmem>>, vector<1x1x8x8xf32>,
    return
  }
  func.func @transform_0(%arg0: i32) -> (i32, i32, i32) {
    %c0_i32 = arith.constant 0 : i32
    %c0_i32_0 = arith.constant 0 : i32
    %c0_i32_1 = arith.constant 0 : i32
    return %arg0, %c0_i32, %c0_i32_0 : i32, i32, i32
  }
  func.func @transform_1(%arg0: i32) -> (i32, i32) {
    %c0_i32 = arith.constant 0 : i32
    %c0_i32_0 = arith.constant 0 : i32
    %c0_i32_1 = arith.constant 0 : i32
    return %c0_i32, %c0_i32_0 : i32, i32
  }
  func.func @transform_2(%arg0: i32) -> (i32, i32) {
    %c0_i32 = arith.constant 0 : i32
    %c0_i32_0 = arith.constant 0 : i32
    %c0_i32_1 = arith.constant 0 : i32
    return %c0_i32, %c0_i32_0 : i32, i32
  }
  func.func @transform_3(%arg0: i32) -> (i32, i32, i32, i32) {
    %c0_i32 = arith.constant 0 : i32
    %c0_i32_0 = arith.constant 0 : i32
    %c0_i32_1 = arith.constant 0 : i32
    %c0_i32_2 = arith.constant 0 : i32
    return %arg0, %c0_i32, %c0_i32_0, %c0_i32_1 : i32, i32, i32, i32
  }
}

</mosaic_0001>

<llo_original>
// kernel: tpu_custom_call.1
$region0: #{tpu_custom_call.1}
  #allocation0 [shape = 'u32[]', space=smem, size = 0x4, offset = 0x4, fixed_abs, tag = 'smem constant byte address 0x4 - core index']
  #allocation1 [shape = 'u32[72,128]{1,0:T(1,128)}', space=vmem, size = 0x9000, scoped, tag = 'internal scratch']
  %s0 = inlined_call_operand.hbm [shape: f32[8,16,16], index: 0, kind: input, shape index: {}]
  %s1 = inlined_call_operand.hbm [shape: f32[16,16], index: 1, kind: input, shape index: {}]
  %s2 = inlined_call_operand.hbm [shape: f32[16,16], index: 2, kind: input, shape index: {}]
  %s3 = inlined_call_operand.hbm [shape: f32[8,4,8,8], index: 3, kind: output, shape index: {}]
  %s4 = sld [smem:[#allocation0]]
  $region34: #{tpu_custom_call.1} parent=0
    _
  %s6 = ssub.s32 1, %s4
  %s7 = scalar_select 0, %s6, %s4
  $region1: #{tpu_custom_call.1} parent=0
    #allocation2 [shape = 'u8[65536]{0}', space=vmem, size = 0x10000, scoped, tag = 'input window, operand 0, single buffered']
    #allocation3 [shape = 's32[1]{0}', space=sflag, size = 0x4, scoped, tag = 'scoped memory for tpu_custom_call.1']
    #allocation4 [shape = 's32[1]{0}', space=sflag, size = 0x4, scoped, tag = 'scoped memory for tpu_custom_call.1']
    #allocation5 [shape = 'u8[8192]{0}', space=vmem, size = 0x2000, scoped, tag = 'input window, operand 1, single buffered']
    #allocation6 [shape = 's32[1]{0}', space=sflag, size = 0x4, scoped, tag = 'scoped memory for tpu_custom_call.1']
    #allocation7 [shape = 'u8[8192]{0}', space=vmem, size = 0x2000, scoped, tag = 'input window, operand 2, single buffered']
    #allocation8 [shape = 'u8[131072]{0}', space=vmem, size = 0x20000, scoped, tag = 'output window, operand 0, single buffered']
    %8 = vsyncpa [#allocation3], 0
    %9 = vsyncpa [#allocation6], 0
    %10 = vsyncpa [#allocation4], 0
    // Predicated region
    $region2: #{tpu_custom_call.1} parent=1 // pred_check
      _
    $region3: #{tpu_custom_call.1} parent=1 // pred_check_branch
      %12 = sbr.rel (0) target = $region5
    $region4: #{tpu_custom_call.1} parent=1 // pred_region
      %14 = vsyncadd [#allocation3], 0
      %s15 = sshll.u32 %s0, 4
      %s16 = int_to_ptr.hbm [resolvable:$true] %s15
      %s17 = sshll.u32 [#allocation2], 4
      %s18 = int_to_ptr.vmem [resolvable:$true] %s17
      %23 = dma.hbm_to_vmem [thread:$0]  %s16, 2048, %s18, [#allocation3], 128, 128, 8
    $region5: #{tpu_custom_call.1} parent=1 // pred_fallthru
      _
    // Predicated region
    $region6: #{tpu_custom_call.1} parent=1 // pred_check
      _
    $region7: #{tpu_custom_call.1} parent=1 // pred_check_branch
      %25 = sbr.rel (0) target = $region9
    $region8: #{tpu_custom_call.1} parent=1 // pred_region
      %27 = vsyncadd [#allocation6], 0
      %s28 = sshll.u32 %s1, 4
      %s29 = int_to_ptr.hbm [resolvable:$true] %s28
      %s30 = sshll.u32 [#allocation5], 4
      %s31 = int_to_ptr.vmem [resolvable:$true] %s30
      %36 = dma.hbm_to_vmem [thread:$0]  %s29, 256, %s31, [#allocation6], 128, 128, 8
    $region9: #{tpu_custom_call.1} parent=1 // pred_fallthru
      _
    // Predicated region
    $region10: #{tpu_custom_call.1} parent=1 // pred_check
      _
    $region11: #{tpu_custom_call.1} parent=1 // pred_check_branch
      %38 = sbr.rel (0) target = $region13
    $region12: #{tpu_custom_call.1} parent=1 // pred_region
      %40 = vsyncadd [#allocation6], 0
      %s41 = sshll.u32 %s2, 4
      %s42 = int_to_ptr.hbm [resolvable:$true] %s41
      %s43 = sshll.u32 [#allocation7], 4
      %s44 = int_to_ptr.vmem [resolvable:$true] %s43
      %49 = dma.hbm_to_vmem [thread:$0]  %s42, 256, %s44, [#allocation6], 128, 128, 8
    $region13: #{tpu_custom_call.1} parent=1 // pred_fallthru
      _
    // Predicated region
    $region14: #{tpu_custom_call.1} parent=1 // pred_check
      _
    $region15: #{tpu_custom_call.1} parent=1 // pred_check_branch
      %51 = sbr.rel (0) target = $region17
    $region16: #{tpu_custom_call.1} parent=1 // pred_region
      %53 = dma.done [#allocation3], 2048
    $region17: #{tpu_custom_call.1} parent=1 // pred_fallthru
      _
    // Predicated region
    $region18: #{tpu_custom_call.1} parent=1 // pred_check
      _
    $region19: #{tpu_custom_call.1} parent=1 // pred_check_branch
      %55 = sbr.rel (0) target = $region21
    $region20: #{tpu_custom_call.1} parent=1 // pred_region
      %57 = dma.done [#allocation6], 256
    $region21: #{tpu_custom_call.1} parent=1 // pred_fallthru
      _
    // Predicated region
    $region22: #{tpu_custom_call.1} parent=1 // pred_check
      _
    $region23: #{tpu_custom_call.1} parent=1 // pred_check_branch
      %59 = sbr.rel (0) target = $region25
    $region24: #{tpu_custom_call.1} parent=1 // pred_region
      %61 = dma.done [#allocation6], 256
    $region25: #{tpu_custom_call.1} parent=1 // pred_fallthru
      _
    %v62 = vld [vmem:[#allocation5] sm:$0xff]
    %v63 = vld [vmem:[#allocation5 + $0x8] sm:$0xff]
    %v64 = vld [vmem:[#allocation7] sm:$0xff]
    %v65 = vld [vmem:[#allocation7 + $0x8] sm:$0xff]
    %v66 = vld [vmem:[#allocation2] sm:$0xff]
    %v67 = vld [vmem:[#allocation2 + $0x8] sm:$0xff]
    %vm68 = vcmask 130048
    %v70 = vsel %vm68, %v62, 0
    %v73 = vsel %vm68, %v63, 0
    %75 = vmatpush.msra.mxu0 0.0
    %76 = vmatpush.msra.mxu0 0.0
    %77 = vmatpush.msra.mxu0 0.0
    %78 = vmatpush.msra.mxu0 0.0
    %79 = vmatpush.msra.mxu0 0.0
    %80 = vmatpush.msra.mxu0 0.0
    %81 = vmatpush.msra.mxu0 0.0
    %82 = vmatpush.msra.mxu0 0.0
    %83 = vmatpush.msra.mxu0 0.0
    %84 = vmatpush.msra.mxu0 0.0
    %85 = vmatpush.msra.mxu0 0.0
    %86 = vmatpush.msra.mxu0 0.0
    %87 = vmatpush.msra.mxu0 0.0
    %88 = vmatpush.msra.mxu0 0.0
    %89 = vmatpush.msra.mxu0 %v67
    %90 = vmatpush.msra.mxu0 %v66
    %91 = vmatmul.f32.gmra.mxu0 %v70
    %v92 = vpop.f32.mrf.mxu0
    %v93 = vadd.f32 0.0, %v92
    %94 = vmatmul.f32.gmra.mxu0 %v73
    %v95 = vpop.f32.mrf.mxu0
    %v96 = vadd.f32 0.0, %v95
    %97 = vdwg.mxu0
    %v99 = vsel %vm68, %v93, 0
    %v102 = vsel %vm68, %v96, 0
    %104 = vmatpush.msra.mxu0 0.0
    %105 = vmatpush.msra.mxu0 0.0
    %106 = vmatpush.msra.mxu0 0.0
    %107 = vmatpush.msra.mxu0 0.0
    %108 = vmatpush.msra.mxu0 0.0
    %109 = vmatpush.msra.mxu0 0.0
    %110 = vmatpush.msra.mxu0 0.0
    %111 = vmatpush.msra.mxu0 0.0
    %112 = vmatpush.msra.mxu0 0.0
    %113 = vmatpush.msra.mxu0 0.0
    %114 = vmatpush.msra.mxu0 0.0
    %115 = vmatpush.msra.mxu0 0.0
    %116 = vmatpush.msra.mxu0 0.0
    %117 = vmatpush.msra.mxu0 0.0
    %118 = vmatpush.msra.mxu0 %v65
    %119 = vmatpush.msra.mxu0 %v64
    %120 = vmatmul.f32.gmra.mxu0 %v99
    %v121 = vpop.f32.mrf.mxu0
    %v122 = vadd.f32 0.0, %v121
    %123 = vmatmul.f32.gmra.mxu0 %v102
    %v124 = vpop.f32.mrf.mxu0
    %v125 = vadd.f32 0.0, %v124
    %126 = vdwg.mxu0
    %vm127 = vcmask 64512
    %128 = vst.msk [vmem:[#allocation8] sm:$0xff] %vm127, %v122
    %130 = vrot.lane.b32.xlu0 %v122, 120
    %v131 = vpop.permute.xlu0 %130
    %s133 = scalar_lea.vmem [#allocation8], 8
    %134 = vst.msk [vmem:[%s133] sm:$0xff] %vm127, %v131
    %s135 = scalar_lea.vmem [#allocation8], 16
    %136 = vst.msk [vmem:[%s135] sm:$0xff] %vm127, %v125
    %138 = vrot.lane.b32.xlu0 %v125, 120
    %v139 = vpop.permute.xlu0 %138
    %s141 = scalar_lea.vmem [#allocation8], 24
    %142 = vst.msk [vmem:[%s141] sm:$0xff] %vm127, %v139
    %s143 = scalar_lea.vmem [#allocation2], 16
    %v144 = vld [vmem:[%s143] sm:$0xff]
    %v145 = vld [vmem:[%s143 + $0x8] sm:$0xff]
    %146 = vmatpush.msra.mxu0 0.0
    %147 = vmatpush.msra.mxu0 0.0
    %148 = vmatpush.msra.mxu0 0.0
    %149 = vmatpush.msra.mxu0 0.0
    %150 = vmatpush.msra.mxu0 0.0
    %151 = vmatpush.msra.mxu0 0.0
    %152 = vmatpush.msra.mxu0 0.0
    %153 = vmatpush.msra.mxu0 0.0
    %154 = vmatpush.msra.mxu0 0.0
    %155 = vmatpush.msra.mxu0 0.0
    %156 = vmatpush.msra.mxu0 0.0
    %157 = vmatpush.msra.mxu0 0.0
    %158 = vmatpush.msra.mxu0 0.0
    %159 = vmatpush.msra.mxu0 0.0
    %160 = vmatpush.msra.mxu0 %v145
    %161 = vmatpush.msra.mxu0 %v144
    %162 = vmatmul.f32.gmra.mxu0 %v70
    %v163 = vpop.f32.mrf.mxu0
    %v164 = vadd.f32 0.0, %v163
    %165 = vmatmul.f32.gmra.mxu0 %v73
    %v166 = vpop.f32.mrf.mxu0
    %v167 = vadd.f32 0.0, %v166
    %168 = vdwg.mxu0
    %v170 = vsel %vm68, %v164, 0
    %v173 = vsel %vm68, %v167, 0
    %175 = vmatpush.msra.mxu0 0.0
    %176 = vmatpush.msra.mxu0 0.0
    %177 = vmatpush.msra.mxu0 0.0
    %178 = vmatpush.msra.mxu0 0.0
    %179 = vmatpush.msra.mxu0 0.0
    %180 = vmatpush.msra.mxu0 0.0
    %181 = vmatpush.msra.mxu0 0.0
    %182 = vmatpush.msra.mxu0 0.0
    %183 = vmatpush.msra.mxu0 0.0
    %184 = vmatpush.msra.mxu0 0.0
    %185 = vmatpush.msra.mxu0 0.0
    %186 = vmatpush.msra.mxu0 0.0
    %187 = vmatpush.msra.mxu0 0.0
    %188 = vmatpush.msra.mxu0 0.0
    %189 = vmatpush.msra.mxu0 %v65
    %190 = vmatpush.msra.mxu0 %v64
    %191 = vmatmul.f32.gmra.mxu0 %v170
    %v192 = vpop.f32.mrf.mxu0
    %v193 = vadd.f32 0.0, %v192
    %194 = vmatmul.f32.gmra.mxu0 %v173
    %v195 = vpop.f32.mrf.mxu0
    %v196 = vadd.f32 0.0, %v195
    %197 = vdwg.mxu0
    %s198 = scalar_lea.vmem [#allocation8], 32
    %199 = vst.msk [vmem:[%s198] sm:$0xff] %vm127, %v193
    %201 = vrot.lane.b32.xlu0 %v193, 120
    %v202 = vpop.permute.xlu0 %201
    %s204 = scalar_lea.vmem [#allocation8], 40
    %205 = vst.msk [vmem:[%s204] sm:$0xff] %vm127, %v202
    %s206 = scalar_lea.vmem [#allocation8], 48
    %207 = vst.msk [vmem:[%s206] sm:$0xff] %vm127, %v196
    %209 = vrot.lane.b32.xlu0 %v196, 120
    %v210 = vpop.permute.xlu0 %209
    %s212 = scalar_lea.vmem [#allocation8], 56
    %213 = vst.msk [vmem:[%s212] sm:$0xff] %vm127, %v210
    %s214 = scalar_lea.vmem [#allocation2], 32
    %v215 = vld [vmem:[%s214] sm:$0xff]
    %v216 = vld [vmem:[%s214 + $0x8] sm:$0xff]
    %217 = vmatpush.msra.mxu0 0.0
    %218 = vmatpush.msra.mxu0 0.0
    %219 = vmatpush.msra.mxu0 0.0
    %220 = vmatpush.msra.mxu0 0.0
    %221 = vmatpush.msra.mxu0 0.0
    %222 = vmatpush.msra.mxu0 0.0
    %223 = vmatpush.msra.mxu0 0.0
    %224 = vmatpush.msra.mxu0 0.0
    %225 = vmatpush.msra.mxu0 0.0
    %226 = vmatpush.msra.mxu0 0.0
    %227 = vmatpush.msra.mxu0 0.0
    %228 = vmatpush.msra.mxu0 0.0
    %229 = vmatpush.msra.mxu0 0.0
    %230 = vmatpush.msra.mxu0 0.0
    %231 = vmatpush.msra.mxu0 %v216
    %232 = vmatpush.msra.mxu0 %v215
    %233 = vmatmul.f32.gmra.mxu0 %v70
    %v234 = vpop.f32.mrf.mxu0
    %v235 = vadd.f32 0.0, %v234
    %236 = vmatmul.f32.gmra.mxu0 %v73
    %v237 = vpop.f32.mrf.mxu0
    %v238 = vadd.f32 0.0, %v237
    %239 = vdwg.mxu0
    %v241 = vsel %vm68, %v235, 0
    %v244 = vsel %vm68, %v238, 0
    %246 = vmatpush.msra.mxu0 0.0
    %247 = vmatpush.msra.mxu0 0.0
    %248 = vmatpush.msra.mxu0 0.0
    %249 = vmatpush.msra.mxu0 0.0
    %250 = vmatpush.msra.mxu0 0.0
    %251 = vmatpush.msra.mxu0 0.0
    %252 = vmatpush.msra.mxu0 0.0
    %253 = vmatpush.msra.mxu0 0.0
    %254 = vmatpush.msra.mxu0 0.0
    %255 = vmatpush.msra.mxu0 0.0
    %256 = vmatpush.msra.mxu0 0.0
    %257 = vmatpush.msra.mxu0 0.0
    %258 = vmatpush.msra.mxu0 0.0
    %259 = vmatpush.msra.mxu0 0.0
    %260 = vmatpush.msra.mxu0 %v65
    %261 = vmatpush.msra.mxu0 %v64
    %262 = vmatmul.f32.gmra.mxu0 %v241
    %v263 = vpop.f32.mrf.mxu0
    %v264 = vadd.f32 0.0, %v263
    %265 = vmatmul.f32.gmra.mxu0 %v244
    %v266 = vpop.f32.mrf.mxu0
    %v267 = vadd.f32 0.0, %v266
    %268 = vdwg.mxu0
    %s269 = scalar_lea.vmem [#allocation8], 64
    %270 = vst.msk [vmem:[%s269] sm:$0xff] %vm127, %v264
    %272 = vrot.lane.b32.xlu0 %v264, 120
    %v273 = vpop.permute.xlu0 %272
    %s275 = scalar_lea.vmem [#allocation8], 72
    %276 = vst.msk [vmem:[%s275] sm:$0xff] %vm127, %v273
    %s277 = scalar_lea.vmem [#allocation8], 80
    %278 = vst.msk [vmem:[%s277] sm:$0xff] %vm127, %v267
    %280 = vrot.lane.b32.xlu0 %v267, 120
    %v281 = vpop.permute.xlu0 %280
    %s283 = scalar_lea.vmem [#allocation8], 88
    %284 = vst.msk [vmem:[%s283] sm:$0xff] %vm127, %v281
    %s285 = scalar_lea.vmem [#allocation2], 48
    %v286 = vld [vmem:[%s285] sm:$0xff]
    %v287 = vld [vmem:[%s285 + $0x8] sm:$0xff]
    %288 = vmatpush.msra.mxu0 0.0
    %289 = vmatpush.msra.mxu0 0.0
    %290 = vmatpush.msra.mxu0 0.0
    %291 = vmatpush.msra.mxu0 0.0
    %292 = vmatpush.msra.mxu0 0.0
    %293 = vmatpush.msra.mxu0 0.0
    %294 = vmatpush.msra.mxu0 0.0
    %295 = vmatpush.msra.mxu0 0.0
    %296 = vmatpush.msra.mxu0 0.0
    %297 = vmatpush.msra.mxu0 0.0
    %298 = vmatpush.msra.mxu0 0.0
    %299 = vmatpush.msra.mxu0 0.0
    %300 = vmatpush.msra.mxu0 0.0
    %301 = vmatpush.msra.mxu0 0.0
    %302 = vmatpush.msra.mxu0 %v287
    %303 = vmatpush.msra.mxu0 %v286
    %304 = vmatmul.f32.gmra.mxu0 %v70
    %v305 = vpop.f32.mrf.mxu0
    %v306 = vadd.f32 0.0, %v305
    %307 = vmatmul.f32.gmra.mxu0 %v73
    %v308 = vpop.f32.mrf.mxu0
    %v309 = vadd.f32 0.0, %v308
    %310 = vdwg.mxu0
    %v312 = vsel %vm68, %v306, 0
    %v315 = vsel %vm68, %v309, 0
    %317 = vmatpush.msra.mxu0 0.0
    %318 = vmatpush.msra.mxu0 0.0
    %319 = vmatpush.msra.mxu0 0.0
    %320 = vmatpush.msra.mxu0 0.0
    %321 = vmatpush.msra.mxu0 0.0
    %322 = vmatpush.msra.mxu0 0.0
    %323 = vmatpush.msra.mxu0 0.0
    %324 = vmatpush.msra.mxu0 0.0
    %325 = vmatpush.msra.mxu0 0.0
    %326 = vmatpush.msra.mxu0 0.0
    %327 = vmatpush.msra.mxu0 0.0
    %328 = vmatpush.msra.mxu0 0.0
    %329 = vmatpush.msra.mxu0 0.0
    %330 = vmatpush.msra.mxu0 0.0
    %331 = vmatpush.msra.mxu0 %v65
    %332 = vmatpush.msra.mxu0 %v64
    %333 = vmatmul.f32.gmra.mxu0 %v312
    %v334 = vpop.f32.mrf.mxu0
    %v335 = vadd.f32 0.0, %v334
    %336 = vmatmul.f32.gmra.mxu0 %v315
    %v337 = vpop.f32.mrf.mxu0
    %v338 = vadd.f32 0.0, %v337
    %339 = vdwg.mxu0
    %s340 = scalar_lea.vmem [#allocation8], 96
    %341 = vst.msk [vmem:[%s340] sm:$0xff] %vm127, %v335
    %343 = vrot.lane.b32.xlu0 %v335, 120
    %v344 = vpop.permute.xlu0 %343
    %s346 = scalar_lea.vmem [#allocation8], 104
    %347 = vst.msk [vmem:[%s346] sm:$0xff] %vm127, %v344
    %s348 = scalar_lea.vmem [#allocation8], 112
    %349 = vst.msk [vmem:[%s348] sm:$0xff] %vm127, %v338
    %351 = vrot.lane.b32.xlu0 %v338, 120
    %v352 = vpop.permute.xlu0 %351
    %s354 = scalar_lea.vmem [#allocation8], 120
    %355 = vst.msk [vmem:[%s354] sm:$0xff] %vm127, %v352
    %s356 = scalar_lea.vmem [#allocation2], 64
    %v357 = vld [vmem:[%s356] sm:$0xff]
    %v358 = vld [vmem:[%s356 + $0x8] sm:$0xff]
    %359 = vmatpush.msra.mxu0 0.0
    %360 = vmatpush.msra.mxu0 0.0
    %361 = vmatpush.msra.mxu0 0.0
    %362 = vmatpush.msra.mxu0 0.0
    %363 = vmatpush.msra.mxu0 0.0
    %364 = vmatpush.msra.mxu0 0.0
    %365 = vmatpush.msra.mxu0 0.0
    %366 = vmatpush.msra.mxu0 0.0
    %367 = vmatpush.msra.mxu0 0.0
    %368 = vmatpush.msra.mxu0 0.0
    %369 = vmatpush.msra.mxu0 0.0
    %370 = vmatpush.msra.mxu0 0.0
    %371 = vmatpush.msra.mxu0 0.0
    %372 = vmatpush.msra.mxu0 0.0
    %373 = vmatpush.msra.mxu0 %v358
    %374 = vmatpush.msra.mxu0 %v357
    %375 = vmatmul.f32.gmra.mxu0 %v70
    %v376 = vpop.f32.mrf.mxu0
    %v377 = vadd.f32 0.0, %v376
    %378 = vmatmul.f32.gmra.mxu0 %v73
    %v379 = vpop.f32.mrf.mxu0
    %v380 = vadd.f32 0.0, %v379
    %381 = vdwg.mxu0
    %v383 = vsel %vm68, %v377, 0
    %v386 = vsel %vm68, %v380, 0
    %388 = vmatpush.msra.mxu0 0.0
    %389 = vmatpush.msra.mxu0 0.0
    %390 = vmatpush.msra.mxu0 0.0
    %391 = vmatpush.msra.mxu0 0.0
    %392 = vmatpush.msra.mxu0 0.0
    %393 = vmatpush.msra.mxu0 0.0
    %394 = vmatpush.msra.mxu0 0.0
    %395 = vmatpush.msra.mxu0 0.0
    %396 = vmatpush.msra.mxu0 0.0
    %397 = vmatpush.msra.mxu0 0.0
    %398 = vmatpush.msra.mxu0 0.0
    %399 = vmatpush.msra.mxu0 0.0
    %400 = vmatpush.msra.mxu0 0.0
    %401 = vmatpush.msra.mxu0 0.0
    %402 = vmatpush.msra.mxu0 %v65
    %403 = vmatpush.msra.mxu0 %v64
    %404 = vmatmul.f32.gmra.mxu0 %v383
    %v405 = vpop.f32.mrf.mxu0
    %v406 = vadd.f32 0.0, %v405
    %407 = vmatmul.f32.gmra.mxu0 %v386
    %v408 = vpop.f32.mrf.mxu0
    %v409 = vadd.f32 0.0, %v408
    %410 = vdwg.mxu0
    %s411 = scalar_lea.vmem [#allocation8], 128
    %412 = vst.msk [vmem:[%s411] sm:$0xff] %vm127, %v406
    %414 = vrot.lane.b32.xlu0 %v406, 120
    %v415 = vpop.permute.xlu0 %414
    %s417 = scalar_lea.vmem [#allocation8], 136
    %418 = vst.msk [vmem:[%s417] sm:$0xff] %vm127, %v415
    %s419 = scalar_lea.vmem [#allocation8], 144
    %420 = vst.msk [vmem:[%s419] sm:$0xff] %vm127, %v409
    %422 = vrot.lane.b32.xlu0 %v409, 120
    %v423 = vpop.permute.xlu0 %422
    %s425 = scalar_lea.vmem [#allocation8], 152
    %426 = vst.msk [vmem:[%s425] sm:$0xff] %vm127, %v423
    %s427 = scalar_lea.vmem [#allocation2], 80
    %v428 = vld [vmem:[%s427] sm:$0xff]
    %v429 = vld [vmem:[%s427 + $0x8] sm:$0xff]
    %430 = vmatpush.msra.mxu0 0.0
    %431 = vmatpush.msra.mxu0 0.0
    %432 = vmatpush.msra.mxu0 0.0
    %433 = vmatpush.msra.mxu0 0.0
    %434 = vmatpush.msra.mxu0 0.0
    %435 = vmatpush.msra.mxu0 0.0
    %436 = vmatpush.msra.mxu0 0.0
    %437 = vmatpush.msra.mxu0 0.0
    %438 = vmatpush.msra.mxu0 0.0
    %439 = vmatpush.msra.mxu0 0.0
    %440 = vmatpush.msra.mxu0 0.0
    %441 = vmatpush.msra.mxu0 0.0
    %442 = vmatpush.msra.mxu0 0.0
    %443 = vmatpush.msra.mxu0 0.0
    %444 = vmatpush.msra.mxu0 %v429
    %445 = vmatpush.msra.mxu0 %v428
    %446 = vmatmul.f32.gmra.mxu0 %v70
    %v447 = vpop.f32.mrf.mxu0
    %v448 = vadd.f32 0.0, %v447
    %449 = vmatmul.f32.gmra.mxu0 %v73
    %v450 = vpop.f32.mrf.mxu0
    %v451 = vadd.f32 0.0, %v450
    %452 = vdwg.mxu0
    %v454 = vsel %vm68, %v448, 0
    %v457 = vsel %vm68, %v451, 0
    %459 = vmatpush.msra.mxu0 0.0
    %460 = vmatpush.msra.mxu0 0.0
    %461 = vmatpush.msra.mxu0 0.0
    %462 = vmatpush.msra.mxu0 0.0
    %463 = vmatpush.msra.mxu0 0.0
    %464 = vmatpush.msra.mxu0 0.0
    %465 = vmatpush.msra.mxu0 0.0
    %466 = vmatpush.msra.mxu0 0.0
    %467 = vmatpush.msra.mxu0 0.0
    %468 = vmatpush.msra.mxu0 0.0
    %469 = vmatpush.msra.mxu0 0.0
    %470 = vmatpush.msra.mxu0 0.0
    %471 = vmatpush.msra.mxu0 0.0
    %472 = vmatpush.msra.mxu0 0.0
    %473 = vmatpush.msra.mxu0 %v65
    %474 = vmatpush.msra.mxu0 %v64
    %475 = vmatmul.f32.gmra.mxu0 %v454
    %v476 = vpop.f32.mrf.mxu0
    %v477 = vadd.f32 0.0, %v476
    %478 = vmatmul.f32.gmra.mxu0 %v457
    %v479 = vpop.f32.mrf.mxu0
    %v480 = vadd.f32 0.0, %v479
    %481 = vdwg.mxu0
    %s482 = scalar_lea.vmem [#allocation8], 160
    %483 = vst.msk [vmem:[%s482] sm:$0xff] %vm127, %v477
    %485 = vrot.lane.b32.xlu0 %v477, 120
    %v486 = vpop.permute.xlu0 %485
    %s488 = scalar_lea.vmem [#allocation8], 168
    %489 = vst.msk [vmem:[%s488] sm:$0xff] %vm127, %v486
    %s490 = scalar_lea.vmem [#allocation8], 176
    %491 = vst.msk [vmem:[%s490] sm:$0xff] %vm127, %v480
    %493 = vrot.lane.b32.xlu0 %v480, 120
    %v494 = vpop.permute.xlu0 %493
    %s496 = scalar_lea.vmem [#allocation8], 184
    %497 = vst.msk [vmem:[%s496] sm:$0xff] %vm127, %v494
    %s498 = scalar_lea.vmem [#allocation2], 96
    %v499 = vld [vmem:[%s498] sm:$0xff]
    %v500 = vld [vmem:[%s498 + $0x8] sm:$0xff]
    %501 = vmatpush.msra.mxu0 0.0
    %502 = vmatpush.msra.mxu0 0.0
    %503 = vmatpush.msra.mxu0 0.0
    %504 = vmatpush.msra.mxu0 0.0
    %505 = vmatpush.msra.mxu0 0.0
    %506 = vmatpush.msra.mxu0 0.0
    %507 = vmatpush.msra.mxu0 0.0
    %508 = vmatpush.msra.mxu0 0.0
    %509 = vmatpush.msra.mxu0 0.0
    %510 = vmatpush.msra.mxu0 0.0
    %511 = vmatpush.msra.mxu0 0.0
    %512 = vmatpush.msra.mxu0 0.0
    %513 = vmatpush.msra.mxu0 0.0
    %514 = vmatpush.msra.mxu0 0.0
    %515 = vmatpush.msra.mxu0 %v500
    %516 = vmatpush.msra.mxu0 %v499
    %517 = vmatmul.f32.gmra.mxu0 %v70
    %v518 = vpop.f32.mrf.mxu0
    %v519 = vadd.f32 0.0, %v518
    %520 = vmatmul.f32.gmra.mxu0 %v73
    %v521 = vpop.f32.mrf.mxu0
    %v522 = vadd.f32 0.0, %v521
    %523 = vdwg.mxu0
    %v525 = vsel %vm68, %v519, 0
    %v528 = vsel %vm68, %v522, 0
    %530 = vmatpush.msra.mxu0 0.0
    %531 = vmatpush.msra.mxu0 0.0
    %532 = vmatpush.msra.mxu0 0.0
    %533 = vmatpush.msra.mxu0 0.0
    %534 = vmatpush.msra.mxu0 0.0
    %535 = vmatpush.msra.mxu0 0.0
    %536 = vmatpush.msra.mxu0 0.0
    %537 = vmatpush.msra.mxu0 0.0
    %538 = vmatpush.msra.mxu0 0.0
    %539 = vmatpush.msra.mxu0 0.0
    %540 = vmatpush.msra.mxu0 0.0
    %541 = vmatpush.msra.mxu0 0.0
    %542 = vmatpush.msra.mxu0 0.0
    %543 = vmatpush.msra.mxu0 0.0
    %544 = vmatpush.msra.mxu0 %v65
    %545 = vmatpush.msra.mxu0 %v64
    %546 = vmatmul.f32.gmra.mxu0 %v525
    %v547 = vpop.f32.mrf.mxu0
    %v548 = vadd.f32 0.0, %v547
    %549 = vmatmul.f32.gmra.mxu0 %v528
    %v550 = vpop.f32.mrf.mxu0
    %v551 = vadd.f32 0.0, %v550
    %552 = vdwg.mxu0
    %s553 = scalar_lea.vmem [#allocation8], 192
    %554 = vst.msk [vmem:[%s553] sm:$0xff] %vm127, %v548
    %556 = vrot.lane.b32.xlu0 %v548, 120
    %v557 = vpop.permute.xlu0 %556
    %s559 = scalar_lea.vmem [#allocation8], 200
    %560 = vst.msk [vmem:[%s559] sm:$0xff] %vm127, %v557
    %s561 = scalar_lea.vmem [#allocation8], 208
    %562 = vst.msk [vmem:[%s561] sm:$0xff] %vm127, %v551
    %564 = vrot.lane.b32.xlu0 %v551, 120
    %v565 = vpop.permute.xlu0 %564
    %s567 = scalar_lea.vmem [#allocation8], 216
    %568 = vst.msk [vmem:[%s567] sm:$0xff] %vm127, %v565
    %s569 = scalar_lea.vmem [#allocation2], 112
    %v570 = vld [vmem:[%s569] sm:$0xff]
    %v571 = vld [vmem:[%s569 + $0x8] sm:$0xff]
    %572 = vmatpush.msra.mxu0 0.0
    %573 = vmatpush.msra.mxu0 0.0
    %574 = vmatpush.msra.mxu0 0.0
    %575 = vmatpush.msra.mxu0 0.0
    %576 = vmatpush.msra.mxu0 0.0
    %577 = vmatpush.msra.mxu0 0.0
    %578 = vmatpush.msra.mxu0 0.0
    %579 = vmatpush.msra.mxu0 0.0
    %580 = vmatpush.msra.mxu0 0.0
    %581 = vmatpush.msra.mxu0 0.0
    %582 = vmatpush.msra.mxu0 0.0
    %583 = vmatpush.msra.mxu0 0.0
    %584 = vmatpush.msra.mxu0 0.0
    %585 = vmatpush.msra.mxu0 0.0
    %586 = vmatpush.msra.mxu0 %v571
    %587 = vmatpush.msra.mxu0 %v570
    %588 = vmatmul.f32.gmra.mxu0 %v70
    %v589 = vpop.f32.mrf.mxu0
    %v590 = vadd.f32 0.0, %v589
    %591 = vmatmul.f32.gmra.mxu0 %v73
    %v592 = vpop.f32.mrf.mxu0
    %v593 = vadd.f32 0.0, %v592
    %594 = vdwg.mxu0
    %v596 = vsel %vm68, %v590, 0
    %v599 = vsel %vm68, %v593, 0
    %601 = vmatpush.msra.mxu0 0.0
    %602 = vmatpush.msra.mxu0 0.0
    %603 = vmatpush.msra.mxu0 0.0
    %604 = vmatpush.msra.mxu0 0.0
    %605 = vmatpush.msra.mxu0 0.0
    %606 = vmatpush.msra.mxu0 0.0
    %607 = vmatpush.msra.mxu0 0.0
    %608 = vmatpush.msra.mxu0 0.0
    %609 = vmatpush.msra.mxu0 0.0
    %610 = vmatpush.msra.mxu0 0.0
    %611 = vmatpush.msra.mxu0 0.0
    %612 = vmatpush.msra.mxu0 0.0
    %613 = vmatpush.msra.mxu0 0.0
    %614 = vmatpush.msra.mxu0 0.0
    %615 = vmatpush.msra.mxu0 %v65
    %616 = vmatpush.msra.mxu0 %v64
    %617 = vmatmul.f32.gmra.mxu0 %v596
    %v618 = vpop.f32.mrf.mxu0
    %v619 = vadd.f32 0.0, %v618
    %620 = vmatmul.f32.gmra.mxu0 %v599
    %v621 = vpop.f32.mrf.mxu0
    %v622 = vadd.f32 0.0, %v621
    %623 = vdwg.mxu0
    %s624 = scalar_lea.vmem [#allocation8], 224
    %625 = vst.msk [vmem:[%s624] sm:$0xff] %vm127, %v619
    %627 = vrot.lane.b32.xlu0 %v619, 120
    %v628 = vpop.permute.xlu0 %627
    %s630 = scalar_lea.vmem [#allocation8], 232
    %631 = vst.msk [vmem:[%s630] sm:$0xff] %vm127, %v628
    %s632 = scalar_lea.vmem [#allocation8], 240
    %633 = vst.msk [vmem:[%s632] sm:$0xff] %vm127, %v622
    %635 = vrot.lane.b32.xlu0 %v622, 120
    %v636 = vpop.permute.xlu0 %635
    %s638 = scalar_lea.vmem [#allocation8], 248
    %639 = vst.msk [vmem:[%s638] sm:$0xff] %vm127, %v636
    // Predicated region
    $region26: #{tpu_custom_call.1} parent=1 // pred_check
      _
    $region27: #{tpu_custom_call.1} parent=1 // pred_check_branch
      %641 = sbr.rel (0) target = $region29
    $region28: #{tpu_custom_call.1} parent=1 // pred_region
      %643 = vsyncadd [#allocation4], 0
      %s644 = sshll.u32 [#allocation8], 4
      %s645 = int_to_ptr.vmem [resolvable:$true] %s644
      %s646 = sshll.u32 %s3, 4
      %s647 = int_to_ptr.hbm [resolvable:$true] %s646
      %652 = dma.vmem_to_hbm [thread:$0]  %s645, 4096, %s647, [#allocation4], 128, 128, 8
    $region29: #{tpu_custom_call.1} parent=1 // pred_fallthru
      _
    // Predicated region
    $region30: #{tpu_custom_call.1} parent=1 // pred_check
      _
    $region31: #{tpu_custom_call.1} parent=1 // pred_check_branch
      %654 = sbr.rel (0) target = $region33
    $region32: #{tpu_custom_call.1} parent=1 // pred_region
      %656 = dma.done [#allocation4], 4096
    $region33: #{tpu_custom_call.1} parent=1 // pred_fallthru
      _
    %657 = vsyncpa [#allocation3], 1
    %658 = vsyncpa [#allocation6], 1
    %659 = vsyncpa [#allocation4], 1

</llo_original>
